<compile_context>
chip_gen: v5e
topology: v5e:2x2
jax: 0.10.0
libtpu: 0.0.40
codegen_flags: <defaults>
</compile_context>

<pallas_src>
import math
from functools import partial

import jax
import jax.numpy as jnp
from jax import lax
from jax.experimental import pallas as pl
from jax.experimental.pallas import tpu as pltpu


def _gelu_exact(h, *, approx_recip=False):
    """Exact (erf-based) gelu; erf via Abramowitz-Stegun 7.1.26 (|err| < 1.5e-7).

    Only mul/add/where/exp/reciprocal: the exp and the reciprocal run on the EUP,
    keeping the VALU path to the Horner polynomial.
    """
    z = h * 0.7071067811865476
    s = jnp.where(z < 0.0, -1.0, 1.0)
    az = z * s
    t = pl.reciprocal(1.0 + 0.3275911 * az, approx=approx_recip)
    poly = ((((1.061405429 * t - 1.453152027) * t + 1.421413741) * t
             - 0.284496736) * t + 0.254829592) * t
    erf = s * (1.0 - poly * jnp.exp(-az * az))
    return 0.5 * h * (1.0 + erf)


def _feedforward_kernel(x_ref, w1t2_ref, c1_ref, w2tm2_ref, w2sq_ref, o_ref,
                        *, mxu_precision, approx_recip):
    f32 = jnp.float32
    x = x_ref[...].astype(f32)                                    # (tr, dim)

    # proj_in: h = 2*x@W1^T - ||x||^2 + (b1 - ||W1_j||^2)
    # (factor 2 folded into w1t2, bias/weight-norm folded into c1)
    x_sq = jnp.sum(x * x, axis=-1, keepdims=True)                 # (tr, 1) f32
    xm = x.astype(w1t2_ref.dtype)                                 # bf16 on fast path
    h = jnp.dot(xm, w1t2_ref[...],
                preferred_element_type=f32,
                precision=mxu_precision)                          # (tr, dim_inner) f32
    h = h - x_sq + c1_ref[...]

    g = _gelu_exact(h, approx_recip=approx_recip)                 # (tr, dim_inner) f32

    # proj_out: cdist(g, W2) = sqrt( ||g||^2 - 2*g@W2^T + ||W2_d||^2 )
    # (factor -2 folded into w2tm2)
    g_sq = jnp.sum(g * g, axis=-1, keepdims=True)                 # (tr, 1) f32
    gm = g.astype(w2tm2_ref.dtype)
    d2 = jnp.dot(gm, w2tm2_ref[...],
                 preferred_element_type=f32,
                 precision=mxu_precision)                         # (tr, dim) f32
    d2 = jnp.maximum(d2 + g_sq + w2sq_ref[...], 0.0)
    o_ref[...] = jnp.sqrt(d2).astype(o_ref.dtype)


def _vmem_budget_bytes():
    """Per-generation usable VMEM (physical capacity minus Mosaic headroom)."""
    try:
        cap = int(pltpu.get_tpu_info().vmem_capacity_bytes)
    except Exception:
        cap = 64 << 20   # conservative fallback: v7x has 64 MiB per TensorCore
    return int(min(max(cap - (12 << 20), 16 << 20), 100 << 20))


def _pick_block_rows(n_rows, dim, dim_inner, x_item, avail_bytes):
    """Row tile: fits the VMEM budget, dtype-quantum aligned, keeps >=2 grid steps."""
    quantum = {1: 32, 2: 16}.get(x_item, 8)      # sublane packing quantum
    # per-row VMEM: double-buffered x & y blocks + f32 intermediates (h, g, dots).
    per_row = 4 * dim * x_item + 6 * dim_inner * 4 + 4 * dim * 4
    tr = max(quantum, min((avail_bytes - (4 << 20)) // per_row, 4096))
    # keep at least 2 grid steps so a "parallel" grid can use both v7x TensorCores
    if n_rows > quantum:
        half = -(-n_rows // 2)
        tr = min(tr, -(-half // quantum) * quantum)
    tr = min(tr, -(-n_rows // quantum) * quantum)
    tr = max(quantum, (tr // quantum) * quantum)
    return int(tr)


def feedforward(x, w1, b1, w2, *, use_bf16_matmul=True):
    """FeedForward forward pass.

    x : (..., dim)
    w1: (dim_inner, dim)   proj_in.weights
    b1: (dim_inner,)       proj_in.bias
    w2: (dim, dim_inner)   proj_out.weights
    use_bf16_matmul: single bf16 MXU pass per matmul (default, fast);
                     False keeps f32 weights + Precision.HIGHEST (validation path).
    """
    orig_shape = x.shape
    dim = orig_shape[-1]
    dim_inner = w1.shape[0]
    assert w1.shape == (dim_inner, dim)
    assert b1.shape == (dim_inner,)
    assert w2.shape == (dim, dim_inner)

    n_rows = int(math.prod(orig_shape[:-1])) if len(orig_shape) > 1 else 1
    x2d = x.reshape(n_rows, dim)

    # Hoisted weight preprocessing (done once, in f32, outside the kernel).
    f32 = jnp.float32
    w1_f = w1.astype(f32)
    w2_f = w2.astype(f32)
    mxu_dtype = jnp.bfloat16 if use_bf16_matmul else f32
    w1t2 = (2.0 * w1_f).T.astype(mxu_dtype)                            # (dim, dim_inner)
    w2tm2 = (-2.0 * w2_f).T.astype(mxu_dtype)                          # (dim_inner, dim)
    c1 = (b1.astype(f32) - jnp.sum(w1_f * w1_f, axis=-1)).reshape(1, dim_inner)
    w2sq = jnp.sum(w2_f * w2_f, axis=-1).reshape(1, dim)

    x_item = jnp.dtype(x.dtype).itemsize
    w_item = jnp.dtype(mxu_dtype).itemsize

    vmem_budget = _vmem_budget_bytes()
    # Resident (constant-index_map) operands are double-buffered by the pipeline.
    weight_bytes = 2 * (w_item * 2 * dim * dim_inner + 4 * (dim_inner + dim))
    if weight_bytes > int(0.6 * vmem_budget):
        # TODO(synk): contraction-axis tiling path for very wide models.
        raise NotImplementedError(
            "dim*dim_inner too large for the resident-weight kernel on this chip")

    tr = _pick_block_rows(n_rows, dim, dim_inner, x_item, vmem_budget - weight_bytes)
    grid = (pl.cdiv(n_rows, tr),)

    # Explicit VMEM limit: resident weights + double-buffered row blocks + f32 temps,
    # with margin, clamped to the per-generation budget.
    block_bytes = 2 * (tr * dim * x_item) * 2
    temp_bytes = 6 * tr * dim_inner * 4 + 4 * tr * dim * 4
    vmem_limit = int(min(vmem_budget,
                         max(32 << 20,
                             int(1.4 * (weight_bytes + block_bytes + temp_bytes)))))

    matmul_passes = 1 if use_bf16_matmul else 6
    cost = pl.CostEstimate(
        flops=int(matmul_passes * 4 * n_rows * dim * dim_inner
                  + n_rows * (25 * dim_inner + 8 * dim)),
        transcendentals=int(n_rows * dim_inner),
        bytes_accessed=int(2 * n_rows * dim * x_item
                           + w_item * 2 * dim * dim_inner + 4 * (dim_inner + dim)),
    )

    kernel = partial(
        _feedforward_kernel,
        mxu_precision=(None if use_bf16_matmul else lax.Precision.HIGHEST),
        approx_recip=use_bf16_matmul,
    )

    out2d = pl.pallas_call(
        kernel,
        out_shape=jax.ShapeDtypeStruct((n_rows, dim), x.dtype),
        grid_spec=pltpu.PrefetchScalarGridSpec(
            num_scalar_prefetch=0,
            grid=grid,
            in_specs=[
                pl.BlockSpec((tr, dim), lambda i: (i, 0)),           # x row tile
                pl.BlockSpec((dim, dim_inner), lambda i: (0, 0)),    # 2*W1^T   (resident)
                pl.BlockSpec((1, dim_inner), lambda i: (0, 0)),      # b1-||W1||^2
                pl.BlockSpec((dim_inner, dim), lambda i: (0, 0)),    # -2*W2^T  (resident)
                pl.BlockSpec((1, dim), lambda i: (0, 0)),            # ||W2||^2
            ],
            out_specs=pl.BlockSpec((tr, dim), lambda i: (i, 0)),
        ),
        compiler_params=pltpu.CompilerParams(
            dimension_semantics=("parallel",),
            vmem_limit_bytes=vmem_limit,
        ),
        cost_estimate=cost,
    )(x2d, w1t2, c1, w2tm2, w2sq)

    return out2d.reshape(orig_shape)


def feedforward_ref(x, w1, b1, w2):
    """Pure-JAX reference mirroring the PyTorch module exactly."""
    d2_in = jnp.sum((x[..., None, :] - w1) ** 2, axis=-1)    # (..., dim_inner)
    h = -d2_in + b1                                          # negate=True, +bias
    g = jax.nn.gelu(h, approximate=False)                    # exact erf gelu (F.gelu)
    d2_out = jnp.sum((g[..., None, :] - w2) ** 2, axis=-1)   # (..., dim)
    return jnp.sqrt(d2_out)                                  # torch.cdist (p=2)


if __name__ == "__main__":
    key = jax.random.PRNGKey(0)
    batch, seq, dim, mult = 2, 8, 32, 4
    dim_inner = dim * mult

    kx, k1, kb, k2 = jax.random.split(key, 4)
    # Scale x / W1 so proj_in's negated distances land in gelu's active range.
    x = 0.15 * jax.random.normal(kx, (batch, seq, dim), dtype=jnp.float32)
    w1 = 0.15 * jax.random.normal(k1, (dim_inner, dim), dtype=jnp.float32)
    b1 = jax.random.normal(kb, (dim_inner,), dtype=jnp.float32)
    w2 = jax.random.normal(k2, (dim, dim_inner), dtype=jnp.float32)

    ref = feedforward_ref(x, w1, b1, w2)

    # Validation path: f32 weights + HIGHEST-precision matmuls -> tight tolerance.
    out_f32 = jax.block_until_ready(feedforward(x, w1, b1, w2, use_bf16_matmul=False))
    assert out_f32.shape == (batch, seq, dim)
    err_f32 = float(jnp.max(jnp.abs(out_f32 - ref)))
    assert jnp.allclose(out_f32, ref, atol=1e-4, rtol=1e-4), \
        f"f32 path mismatch vs reference: {err_f32}"

    # Fast (default) path: bf16 weights, single MXU pass per matmul -> bf16 tolerance.
    out_fast = jax.block_until_ready(feedforward(x, w1, b1, w2))
    assert out_fast.shape == (batch, seq, dim)
    err_fast = float(jnp.max(jnp.abs(out_fast - ref)))
    assert jnp.allclose(out_fast, ref, atol=3e-2, rtol=3e-3), \
        f"bf16 path mismatch vs reference: {err_fast}"

    print("KERNEL_OK")
</pallas_src>

<mosaic_0001>
module attributes {stable_mosaic.version = 11 : i64} {
  func.func @_feedforward_kernel(%arg0: i32, %arg1: memref<8x32xf32, #tpu.memory_space<vmem>>, %arg2: memref<32x128xf32, #tpu.memory_space<vmem>>, %arg3: memref<1x128xf32, #tpu.memory_space<vmem>>, %arg4: memref<128x32xf32, #tpu.memory_space<vmem>>, %arg5: memref<1x32xf32, #tpu.memory_space<vmem>>, %arg6: memref<8x32xf32, #tpu.memory_space<vmem>>) attributes {dimension_semantics = [#tpu.dimension_semantics<parallel>], iteration_bounds = array<i64: 2>, scalar_prefetch = 0 : i64, scratch_operands = 0 : i64, tpu.core_type = #tpu.core_type<tc>, window_params = [{transform_indices = @transform_0, window_bounds = array<i64: 8, 32>}, {pipeline_mode = #tpu.pipeline_mode<synchronous>, transform_indices = @transform_1, window_bounds = array<i64: 32, 128>}, {pipeline_mode = #tpu.pipeline_mode<synchronous>, transform_indices = @transform_2, window_bounds = array<i64: 1, 128>}, {pipeline_mode = #tpu.pipeline_mode<synchronous>, transform_indices = @transform_3, window_bounds = array<i64: 128, 32>}, {pipeline_mode = #tpu.pipeline_mode<synchronous>, transform_indices = @transform_4, window_bounds = array<i64: 1, 32>}, {transform_indices = @transform_5, window_bounds = array<i64: 8, 32>}]} {
    %c0 = arith.constant 0 : index
    %c0_0 = arith.constant 0 : index
    %0 = vector.load %arg1[%c0, %c0_0] : memref<8x32xf32, #tpu.memory_space<vmem>>, vector<8x32xf32>
    %1 = arith.mulf %0, %0 : vector<8x32xf32>
    %cst = arith.constant dense<0.000000e+00> : vector<8xf32>
    %2 = vector.multi_reduction <add>, %1, %cst [1] : vector<8x32xf32> to vector<8xf32>
    %3 = vector.shape_cast %2 : vector<8xf32> to vector<8x1xf32>
    %c0_1 = arith.constant 0 : index
    %c0_2 = arith.constant 0 : index
    %4 = vector.load %arg2[%c0_1, %c0_2] : memref<32x128xf32, #tpu.memory_space<vmem>>, vector<32x128xf32>
    %cst_3 = arith.constant dense<0.000000e+00> : vector<8x128xf32>
    %5 = tpu.matmul %0, %4, %cst_3 {dimension_numbers = #tpu.dot_dimension_numbers<[1], [0], [0], [1], [0, 0, 1, 1], [], []>, precision = #tpu.contract_precision<fp32>} : vector<8x32xf32>, vector<32x128xf32>, vector<8x128xf32> -> vector<8x128xf32>
    %6 = vector.broadcast %3 : vector<8x1xf32> to vector<8x128xf32>
    %7 = arith.subf %5, %6 : vector<8x128xf32>
    %c0_4 = arith.constant 0 : index
    %c0_5 = arith.constant 0 : index
    %8 = vector.load %arg3[%c0_4, %c0_5] : memref<1x128xf32, #tpu.memory_space<vmem>>, vector<1x128xf32>
    %9 = vector.broadcast %8 : vector<1x128xf32> to vector<8x128xf32>
    %10 = arith.addf %7, %9 : vector<8x128xf32>
    %cst_6 = arith.constant 0.707106769 : f32
    %11 = vector.broadcast %cst_6 : f32 to vector<8x128xf32>
    %12 = arith.mulf %10, %11 : vector<8x128xf32>
    %cst_7 = arith.constant 0.000000e+00 : f32
    %13 = vector.broadcast %cst_7 : f32 to vector<8x128xf32>
    %14 = arith.cmpf olt, %12, %13 : vector<8x128xf32>
    %cst_8 = arith.constant -1.000000e+00 : f32
    %cst_9 = arith.constant 1.000000e+00 : f32
    %15 = vector.broadcast %cst_8 : f32 to vector<8x128xf32>
    %16 = vector.broadcast %cst_9 : f32 to vector<8x128xf32>
    %17 = arith.select %14, %15, %16 : vector<8x128xi1>, vector<8x128xf32>
    %18 = arith.mulf %12, %17 : vector<8x128xf32>
    %cst_10 = arith.constant 0.327591091 : f32
    %19 = vector.broadcast %cst_10 : f32 to vector<8x128xf32>
    %20 = arith.mulf %19, %18 : vector<8x128xf32>
    %cst_11 = arith.constant 1.000000e+00 : f32
    %21 = vector.broadcast %cst_11 : f32 to vector<8x128xf32>
    %22 = arith.addf %21, %20 : vector<8x128xf32>
    %23 = tpu.reciprocal %22 : vector<8x128xf32> -> vector<8x128xf32>
    %cst_12 = arith.constant 1.06140542 : f32
    %24 = vector.broadcast %cst_12 : f32 to vector<8x128xf32>
    %25 = arith.mulf %24, %23 : vector<8x128xf32>
    %cst_13 = arith.constant 1.45315206 : f32
    %26 = vector.broadcast %cst_13 : f32 to vector<8x128xf32>
    %27 = arith.subf %25, %26 : vector<8x128xf32>
    %28 = arith.mulf %27, %23 : vector<8x128xf32>
    %cst_14 = arith.constant 1.42141378 : f32
    %29 = vector.broadcast %cst_14 : f32 to vector<8x128xf32>
    %30 = arith.addf %28, %29 : vector<8x128xf32>
    %31 = arith.mulf %30, %23 : vector<8x128xf32>
    %cst_15 = arith.constant 0.284496725 : f32
    %32 = vector.broadcast %cst_15 : f32 to vector<8x128xf32>
    %33 = arith.subf %31, %32 : vector<8x128xf32>
    %34 = arith.mulf %33, %23 : vector<8x128xf32>
    %cst_16 = arith.constant 0.254829586 : f32
    %35 = vector.broadcast %cst_16 : f32 to vector<8x128xf32>
    %36 = arith.addf %34, %35 : vector<8x128xf32>
    %37 = arith.mulf %36, %23 : vector<8x128xf32>
    %cst_17 = arith.constant 0.000000e+00 : f32
    %38 = vector.broadcast %cst_17 : f32 to vector<8x128xf32>
    %39 = arith.subf %38, %18 : vector<8x128xf32>
    %40 = arith.mulf %39, %18 : vector<8x128xf32>
    %41 = math.exp %40 : vector<8x128xf32>
    %42 = arith.mulf %37, %41 : vector<8x128xf32>
    %cst_18 = arith.constant 1.000000e+00 : f32
    %43 = vector.broadcast %cst_18 : f32 to vector<8x128xf32>
    %44 = arith.subf %43, %42 : vector<8x128xf32>
    %45 = arith.mulf %17, %44 : vector<8x128xf32>
    %cst_19 = arith.constant 5.000000e-01 : f32
    %46 = vector.broadcast %cst_19 : f32 to vector<8x128xf32>
    %47 = arith.mulf %46, %10 : vector<8x128xf32>
    %cst_20 = arith.constant 1.000000e+00 : f32
    %48 = vector.broadcast %cst_20 : f32 to vector<8x128xf32>
    %49 = arith.addf %48, %45 : vector<8x128xf32>
    %50 = arith.mulf %47, %49 : vector<8x128xf32>
    %51 = arith.mulf %50, %50 : vector<8x128xf32>
    %cst_21 = arith.constant dense<0.000000e+00> : vector<8xf32>
    %52 = vector.multi_reduction <add>, %51, %cst_21 [1] : vector<8x128xf32> to vector<8xf32>
    %53 = vector.shape_cast %52 : vector<8xf32> to vector<8x1xf32>
    %c0_22 = arith.constant 0 : index
    %c0_23 = arith.constant 0 : index
    %54 = vector.load %arg4[%c0_22, %c0_23] : memref<128x32xf32, #tpu.memory_space<vmem>>, vector<128x32xf32>
    %cst_24 = arith.constant dense<0.000000e+00> : vector<8x32xf32>
    %55 = tpu.matmul %50, %54, %cst_24 {dimension_numbers = #tpu.dot_dimension_numbers<[1], [0], [0], [1], [0, 0, 1, 1], [], []>, precision = #tpu.contract_precision<fp32>} : vector<8x128xf32>, vector<128x32xf32>, vector<8x32xf32> -> vector<8x32xf32>
    %56 = vector.broadcast %53 : vector<8x1xf32> to vector<8x32xf32>
    %57 = arith.addf %55, %56 : vector<8x32xf32>
    %c0_25 = arith.constant 0 : index
    %c0_26 = arith.constant 0 : index
    %58 = vector.load %arg5[%c0_25, %c0_26] : memref<1x32xf32, #tpu.memory_space<vmem>>, vector<1x32xf32>
    %59 = vector.broadcast %58 : vector<1x32xf32> to vector<8x32xf32>
    %60 = arith.addf %57, %59 : vector<8x32xf32>
    %cst_27 = arith.constant 0.000000e+00 : f32
    %61 = vector.broadcast %cst_27 : f32 to vector<8x32xf32>
    %62 = arith.maximumf %60, %61 : vector<8x32xf32>
    %63 = math.sqrt %62 : vector<8x32xf32>
    %c0_28 = arith.constant 0 : index
    %c0_29 = arith.constant 0 : index
    %64 = vector.load %arg6[%c0_28, %c0_29] : memref<8x32xf32, #tpu.memory_space<vmem>>, vector<8x32xf32>
    tpu.vector_store %arg6[%c0_28, %c0_29], %63 {strides = array<i32>} : memref<8x32xf32, #tpu.memory_space<vmem>>, vector<8x32xf32>,
    return
  }
  func.func @transform_0(%arg0: i32) -> (i32, i32) {
    %c0_i32 = arith.constant 0 : i32
    %c0_i32_0 = arith.constant 0 : i32
    return %arg0, %c0_i32 : i32, i32
  }
  func.func @transform_1(%arg0: i32) -> (i32, i32) {
    %c0_i32 = arith.constant 0 : i32
    %c0_i32_0 = arith.constant 0 : i32
    %c0_i32_1 = arith.constant 0 : i32
    return %c0_i32, %c0_i32_0 : i32, i32
  }
  func.func @transform_2(%arg0: i32) -> (i32, i32) {
    %c0_i32 = arith.constant 0 : i32
    %c0_i32_0 = arith.constant 0 : i32
    %c0_i32_1 = arith.constant 0 : i32
    return %c0_i32, %c0_i32_0 : i32, i32
  }
  func.func @transform_3(%arg0: i32) -> (i32, i32) {
    %c0_i32 = arith.constant 0 : i32
    %c0_i32_0 = arith.constant 0 : i32
    %c0_i32_1 = arith.constant 0 : i32
    return %c0_i32, %c0_i32_0 : i32, i32
  }
  func.func @transform_4(%arg0: i32) -> (i32, i32) {
    %c0_i32 = arith.constant 0 : i32
    %c0_i32_0 = arith.constant 0 : i32
    %c0_i32_1 = arith.constant 0 : i32
    return %c0_i32, %c0_i32_0 : i32, i32
  }
  func.func @transform_5(%arg0: i32) -> (i32, i32) {
    %c0_i32 = arith.constant 0 : i32
    %c0_i32_0 = arith.constant 0 : i32
    return %arg0, %c0_i32 : i32, i32
  }
}

</mosaic_0001>

<llo_original>
// kernel: tpu_custom_call.1
$region0: #{tpu_custom_call.1}
  #allocation0 [shape = 'u32[]', space=smem, size = 0x4, offset = 0x4, fixed_abs, tag = 'smem constant byte address 0x4 - core index']
  #allocation1 [shape = 'u32[72,128]{1,0:T(1,128)}', space=vmem, size = 0x9000, scoped, tag = 'internal scratch']
  %s0 = inlined_call_operand.vmem [shape: f32[16,32], index: 0, kind: input, shape index: {}]
  %s1 = inlined_call_operand.vmem [shape: f32[32,128], index: 1, kind: input, shape index: {}]
  %s2 = inlined_call_operand.vmem [shape: f32[1,128], index: 2, kind: input, shape index: {}]
  %s3 = inlined_call_operand.vmem [shape: f32[128,32], index: 3, kind: input, shape index: {}]
  %s4 = inlined_call_operand.vmem [shape: f32[1,32], index: 4, kind: input, shape index: {}]
  %s5 = inlined_call_operand.hbm [shape: f32[16,32], index: 5, kind: output, shape index: {}]
  %s6 = sld [smem:[#allocation0]]
  $region53: #{tpu_custom_call.1} parent=0
    _
  %s8 = ssub.s32 1, %s6
  %s9 = scalar_select 0, %s8, %s6
  $region1: #{tpu_custom_call.1} parent=0
    #allocation2 [shape = 'u8[8192]{0}', space=vmem, size = 0x2000, scoped, tag = 'output window, operand 0']
    #allocation3 [shape = 's32[2]{0}', space=sflag, size = 0x8, scoped, tag = 'scoped memory for tpu_custom_call.1']
    %10 = vsyncpa [#allocation3], 0
    %s11 = scalar_lea.sflag [#allocation3], 1
    %12 = vsyncpa %s11, 0
    loop: start=0, step=1, limit=4
    $region2: #{tpu_custom_call.1} parent=1 // loop_pre_header
      _
    $region3: #{tpu_custom_call.1} parent=1 // loop_header
      %s14 = sphi 0, %s18
      %p15 = scmp.ge.s32.totalorder %s14, 4
      %s24 = sphi 0, %s26
      %s27 = sphi 0, %s24
      %s28 = sphi 0, %s27
      %s44 = sphi 0, %s28
      %s48 = sphi 0, %s48
      %s50 = sphi 0, %s48
      %s51 = sphi 0, %s50
      %s65 = sphi 0, %s51
      %s69 = sphi 0, %s69
      %s71 = sphi 0, %s69
      %s72 = sphi 0, %s71
      %s86 = sphi 0, %s72
      %s90 = sphi 0, %s90
      %s92 = sphi 0, %s90
      %s93 = sphi 0, %s92
      %s107 = sphi 0, %s93
      %s111 = sphi 0, %s111
      %s113 = sphi 0, %s111
      %s114 = sphi 0, %s113
      %s128 = sphi 0, %s114
      %s134 = sphi 0, %s136
      %s137 = sphi 0, %s134
      %s138 = sphi 0, %s137
      %s154 = sphi 0, %s138
    $region4: #{tpu_custom_call.1} parent=1 // loop_header_branch
      %17 = sbr.rel (%p15) target = $region8
    $region5: #{tpu_custom_call.1} parent=1 // loop_body
      %s19 = ssub.s32 %s14, 1
      %s20 = ssub.s32 %s14, 2
      %s21 = sadd.s32 %s14, 1
      %s22 = ssub.s32 %s14, %s21
      %p23 = scmp.eq.s32.totalorder %s22, 0
      %s25 = sadd.s32 %s24, 1
      %s26 = scalar_select %p23, %s24, %s25
      %p29 = pneg %p23
      %p30 = scmp.eq.s32.totalorder %s14, 1
      %p31 = por %p29, %p30
      %p32 = scmp.ne.s32.totalorder %s24, %s27
      %p33 = scmp.eq.s32.totalorder %s14, 0
      %p34 = por %p32, %p33
      %p35 = scmp.ne.s32.totalorder %s24, %s27
      %p36 = scmp.eq.s32.totalorder %s19, 1
      %p37 = por %p35, %p36
      %p38 = scmp.ne.s32.totalorder %s27, %s28
      %p39 = scmp.eq.s32.totalorder %s19, 0
      %p40 = por %p38, %p39
      %p41 = scmp.ne.s32.totalorder %s27, %s28
      %p42 = scmp.eq.s32.totalorder %s20, 1
      %p43 = por %p41, %p42
      %p45 = scmp.ne.s32.totalorder %s28, %s44
      %p46 = scmp.eq.s32.totalorder %s20, 0
      %p47 = por %p45, %p46
      %s49 = sadd.s32 %s48, 1
      %p52 = scmp.eq.s32.totalorder %s14, 1
      %p53 = scmp.ne.s32.totalorder %s48, %s50
      %p54 = scmp.eq.s32.totalorder %s14, 0
      %p55 = por %p53, %p54
      %p56 = scmp.ne.s32.totalorder %s48, %s50
      %p57 = scmp.eq.s32.totalorder %s19, 1
      %p58 = por %p56, %p57
      %p59 = scmp.ne.s32.totalorder %s50, %s51
      %p60 = scmp.eq.s32.totalorder %s19, 0
      %p61 = por %p59, %p60
      %p62 = scmp.ne.s32.totalorder %s50, %s51
      %p63 = scmp.eq.s32.totalorder %s20, 1
      %p64 = por %p62, %p63
      %p66 = scmp.ne.s32.totalorder %s51, %s65
      %p67 = scmp.eq.s32.totalorder %s20, 0
      %p68 = por %p66, %p67
      %s70 = sadd.s32 %s69, 1
      %p73 = scmp.eq.s32.totalorder %s14, 1
      %p74 = scmp.ne.s32.totalorder %s69, %s71
      %p75 = scmp.eq.s32.totalorder %s14, 0
      %p76 = por %p74, %p75
      %p77 = scmp.ne.s32.totalorder %s69, %s71
      %p78 = scmp.eq.s32.totalorder %s19, 1
      %p79 = por %p77, %p78
      %p80 = scmp.ne.s32.totalorder %s71, %s72
      %p81 = scmp.eq.s32.totalorder %s19, 0
      %p82 = por %p80, %p81
      %p83 = scmp.ne.s32.totalorder %s71, %s72
      %p84 = scmp.eq.s32.totalorder %s20, 1
      %p85 = por %p83, %p84
      %p87 = scmp.ne.s32.totalorder %s72, %s86
      %p88 = scmp.eq.s32.totalorder %s20, 0
      %p89 = por %p87, %p88
      %s91 = sadd.s32 %s90, 1
      %p94 = scmp.eq.s32.totalorder %s14, 1
      %p95 = scmp.ne.s32.totalorder %s90, %s92
      %p96 = scmp.eq.s32.totalorder %s14, 0
      %p97 = por %p95, %p96
      %p98 = scmp.ne.s32.totalorder %s90, %s92
      %p99 = scmp.eq.s32.totalorder %s19, 1
      %p100 = por %p98, %p99
      %p101 = scmp.ne.s32.totalorder %s92, %s93
      %p102 = scmp.eq.s32.totalorder %s19, 0
      %p103 = por %p101, %p102
      %p104 = scmp.ne.s32.totalorder %s92, %s93
      %p105 = scmp.eq.s32.totalorder %s20, 1
      %p106 = por %p104, %p105
      %p108 = scmp.ne.s32.totalorder %s93, %s107
      %p109 = scmp.eq.s32.totalorder %s20, 0
      %p110 = por %p108, %p109
      %s112 = sadd.s32 %s111, 1
      %p115 = scmp.eq.s32.totalorder %s14, 1
      %p116 = scmp.ne.s32.totalorder %s111, %s113
      %p117 = scmp.eq.s32.totalorder %s14, 0
      %p118 = por %p116, %p117
      %p119 = scmp.ne.s32.totalorder %s111, %s113
      %p120 = scmp.eq.s32.totalorder %s19, 1
      %p121 = por %p119, %p120
      %p122 = scmp.ne.s32.totalorder %s113, %s114
      %p123 = scmp.eq.s32.totalorder %s19, 0
      %p124 = por %p122, %p123
      %p125 = scmp.ne.s32.totalorder %s113, %s114
      %p126 = scmp.eq.s32.totalorder %s20, 1
      %p127 = por %p125, %p126
      %p129 = scmp.ne.s32.totalorder %s114, %s128
      %p130 = scmp.eq.s32.totalorder %s20, 0
      %p131 = por %p129, %p130
      %s132 = ssub.s32 %s14, %s21
      %p133 = scmp.eq.s32.totalorder %s132, 0
      %s135 = sadd.s32 %s134, 1
      %s136 = scalar_select %p133, %s134, %s135
      %p139 = pneg %p133
      %p140 = scmp.eq.s32.totalorder %s14, 1
      %p141 = por %p139, %p140
      %p142 = scmp.ne.s32.totalorder %s134, %s137
      %p143 = scmp.eq.s32.totalorder %s14, 0
      %p144 = por %p142, %p143
      %p145 = scmp.ne.s32.totalorder %s134, %s137
      %p146 = scmp.eq.s32.totalorder %s19, 1
      %p147 = por %p145, %p146
      %p148 = scmp.ne.s32.totalorder %s137, %s138
      %p149 = scmp.eq.s32.totalorder %s19, 0
      %p150 = por %p148, %p149
      %p151 = scmp.ne.s32.totalorder %s137, %s138
      %p152 = scmp.eq.s32.totalorder %s20, 1
      %p153 = por %p151, %p152
      %p155 = scmp.ne.s32.totalorder %s138, %s154
      %p156 = scmp.eq.s32.totalorder %s20, 0
      %p157 = por %p155, %p156
      %p158 = scmp.le.s32.totalorder 1, %s14
      %p159 = scmp.lt.s32.totalorder %s14, 3
      %p160 = pnand %p158, %p159
      %p161 = pneg %p160
      // Predicated region
      $region9: #{tpu_custom_call.1} parent=5 // pred_check
        _
      $region10: #{tpu_custom_call.1} parent=5 // pred_check_branch
        %163 = sbr.rel (%p160) target = $region12
      $region11: #{tpu_custom_call.1} parent=5 // pred_region
        %s164 = ssub.s32 %s14, 1
        // Predicated region
        $region13: #{tpu_custom_call.1} parent=11 // pred_check
          %p165 = pneg %p61
        $region14: #{tpu_custom_call.1} parent=11 // pred_check_branch
          %167 = sbr.rel (%p165) target = $region16
        $region15: #{tpu_custom_call.1} parent=11 // pred_region
          _
        $region16: #{tpu_custom_call.1} parent=11 // pred_fallthru
          _
        // Predicated region
        $region17: #{tpu_custom_call.1} parent=11 // pred_check
          %p168 = pneg %p82
        $region18: #{tpu_custom_call.1} parent=11 // pred_check_branch
          %170 = sbr.rel (%p168) target = $region20
        $region19: #{tpu_custom_call.1} parent=11 // pred_region
          _
        $region20: #{tpu_custom_call.1} parent=11 // pred_fallthru
          _
        // Predicated region
        $region21: #{tpu_custom_call.1} parent=11 // pred_check
          %p171 = pneg %p103
        $region22: #{tpu_custom_call.1} parent=11 // pred_check_branch
          %173 = sbr.rel (%p171) target = $region24
        $region23: #{tpu_custom_call.1} parent=11 // pred_region
          _
        $region24: #{tpu_custom_call.1} parent=11 // pred_fallthru
          _
        // Predicated region
        $region25: #{tpu_custom_call.1} parent=11 // pred_check
          %p174 = pneg %p124
        $region26: #{tpu_custom_call.1} parent=11 // pred_check_branch
          %176 = sbr.rel (%p174) target = $region28
        $region27: #{tpu_custom_call.1} parent=11 // pred_region
          _
        $region28: #{tpu_custom_call.1} parent=11 // pred_fallthru
          _
      $region12: #{tpu_custom_call.1} parent=5 // pred_fallthru
        _
      %p177 = scmp.lt.s32.totalorder %s14, 2
      // Predicated region
      $region29: #{tpu_custom_call.1} parent=5 // pred_check
        %p178 = pneg %p177
      $region30: #{tpu_custom_call.1} parent=5 // pred_check_branch
        %180 = sbr.rel (%p178) target = $region32
      $region31: #{tpu_custom_call.1} parent=5 // pred_region
        // Predicated region
        $region33: #{tpu_custom_call.1} parent=31 // pred_check
          %p181 = pneg %p34
        $region34: #{tpu_custom_call.1} parent=31 // pred_check_branch
          %183 = sbr.rel (%p181) target = $region36
        $region35: #{tpu_custom_call.1} parent=31 // pred_region
          %p184 = scmp.lt.s32.totalorder %s14, 1
          %s185 = scalar_select %p184, %s14, 1
          %s186 = smul.addr %s185, 8
          %s187 = scalar_lea.vmem %s0, %s186
        $region36: #{tpu_custom_call.1} parent=31 // pred_fallthru
          _
      $region32: #{tpu_custom_call.1} parent=5 // pred_fallthru
        _
      %p188 = scmp.le.s32.totalorder 1, %s14
      %p189 = scmp.lt.s32.totalorder %s14, 3
      %p190 = pnand %p188, %p189
      %p191 = pneg %p190
      // Predicated region
      $region37: #{tpu_custom_call.1} parent=5 // pred_check
        _
      $region38: #{tpu_custom_call.1} parent=5 // pred_check_branch
        %193 = sbr.rel (%p190) target = $region40
      $region39: #{tpu_custom_call.1} parent=5 // pred_region
        %s194 = ssub.s32 %s14, 1
        %p195 = scmp.lt.s32.totalorder %s19, 1
        %s196 = scalar_select %p195, %s19, 1
        %s197 = smul.addr %s196, 8
        %s198 = scalar_lea.vmem %s0, %s197
        %p199 = pneg %p40
        %p200 = pneg %p37
        %p201 = pneg %p61
        %p202 = pneg %p58
        %p203 = pneg %p82
        %p204 = pneg %p79
        %p205 = pneg %p103
        %p206 = pneg %p100
        %p207 = pneg %p124
        %p208 = pneg %p121
        %p209 = pneg %p150
        %p210 = pneg %p147
        %s211 = sand.u32 %s137, 1
        %s212 = scalar_lea.sflag [#allocation3], %s211
        %s213 = sand.u32 %s137, 1
        %s214 = smul.addr %s213, 8
        %s215 = scalar_lea.vmem [#allocation2], %s214
        %p216 = scmp.lt.s32.totalorder %s19, 1
        %s217 = scalar_select %p216, %s19, 1
        %s218 = smul.addr %s217, 8
        %s219 = scalar_lea.vmem %s0, %s218
        %v220 = vld [vmem:[%s219] sm:$0xff]
        %v221 = vmul.f32 %v220, %v220
        %vm222 = vcmask 261120
        %v223 = vsel %vm222, %v221, 0.0
        %224 = vadd.xlane.f32.xlu0 %v223
        %v225 = vpop.xlane.xlu0 %224
        %v226 = vld [vmem:[%s1] sm:$0xff]
        %v227 = vld [vmem:[%s1 + $0x8] sm:$0xff]
        %v228 = vld [vmem:[%s1 + $0x10] sm:$0xff]
        %v229 = vld [vmem:[%s1 + $0x18] sm:$0xff]
        %v231 = vsel %vm222, %v220, 0
        %233 = vmatpush.msra.mxu0 0.0
        %234 = vmatpush.msra.mxu0 0.0
        %235 = vmatpush.msra.mxu0 0.0
        %236 = vmatpush.msra.mxu0 0.0
        %237 = vmatpush.msra.mxu0 0.0
        %238 = vmatpush.msra.mxu0 0.0
        %239 = vmatpush.msra.mxu0 0.0
        %240 = vmatpush.msra.mxu0 0.0
        %241 = vmatpush.msra.mxu0 0.0
        %242 = vmatpush.msra.mxu0 0.0
        %243 = vmatpush.msra.mxu0 0.0
        %244 = vmatpush.msra.mxu0 0.0
        %v245 = vand.u32 %v229, 4294901760
        %246 = vmatpush.msra.mxu0 %v245
        %v247 = vand.u32 %v228, 4294901760
        %248 = vmatpush.msra.mxu0 %v247
        %v249 = vand.u32 %v227, 4294901760
        %250 = vmatpush.msra.mxu0 %v249
        %v251 = vand.u32 %v226, 4294901760
        %252 = vmatpush.msra.mxu0 %v251
        %v253 = vand.u32 %v231, 4294901760
        %v254 = vsub.f32 %v231, %v253
        %v255 = vand.u32 %v254, 4294901760
        %v256 = vsub.f32 %v254, %v255
        %v257 = vand.u32 %v256, 4294901760
        %258 = vmatmul.f32.gmra.mxu0 %v257
        %v259 = vpop.f32.mrf.mxu0
        %v260 = vadd.f32 0.0, %v259
        %261 = vdwg.mxu0
        %262 = vmatpush.msra.mxu0 0.0
        %263 = vmatpush.msra.mxu0 0.0
        %264 = vmatpush.msra.mxu0 0.0
        %265 = vmatpush.msra.mxu0 0.0
        %266 = vmatpush.msra.mxu0 0.0
        %267 = vmatpush.msra.mxu0 0.0
        %268 = vmatpush.msra.mxu0 0.0
        %269 = vmatpush.msra.mxu0 0.0
        %270 = vmatpush.msra.mxu0 0.0
        %271 = vmatpush.msra.mxu0 0.0
        %272 = vmatpush.msra.mxu0 0.0
        %273 = vmatpush.msra.mxu0 0.0
        %v274 = vand.u32 %v229, 4294901760
        %v275 = vsub.f32 %v229, %v274
        %v276 = vand.u32 %v275, 4294901760
        %v277 = vsub.f32 %v275, %v276
        %v278 = vand.u32 %v277, 4294901760
        %279 = vmatpush.msra.mxu0 %v278
        %v280 = vand.u32 %v228, 4294901760
        %v281 = vsub.f32 %v228, %v280
        %v282 = vand.u32 %v281, 4294901760
        %v283 = vsub.f32 %v281, %v282
        %v284 = vand.u32 %v283, 4294901760
        %285 = vmatpush.msra.mxu0 %v284
        %v286 = vand.u32 %v227, 4294901760
        %v287 = vsub.f32 %v227, %v286
        %v288 = vand.u32 %v287, 4294901760
        %v289 = vsub.f32 %v287, %v288
        %v290 = vand.u32 %v289, 4294901760
        %291 = vmatpush.msra.mxu0 %v290
        %v292 = vand.u32 %v226, 4294901760
        %v293 = vsub.f32 %v226, %v292
        %v294 = vand.u32 %v293, 4294901760
        %v295 = vsub.f32 %v293, %v294
        %v296 = vand.u32 %v295, 4294901760
        %297 = vmatpush.msra.mxu0 %v296
        %v298 = vand.u32 %v231, 4294901760
        %299 = vmatmul.f32.gmra.mxu0 %v298
        %v300 = vpop.f32.mrf.mxu0
        %v301 = vadd.f32 %v260, %v300
        %302 = vdwg.mxu0
        %303 = vmatpush.msra.mxu0 0.0
        %304 = vmatpush.msra.mxu0 0.0
        %305 = vmatpush.msra.mxu0 0.0
        %306 = vmatpush.msra.mxu0 0.0
        %307 = vmatpush.msra.mxu0 0.0
        %308 = vmatpush.msra.mxu0 0.0
        %309 = vmatpush.msra.mxu0 0.0
        %310 = vmatpush.msra.mxu0 0.0
        %311 = vmatpush.msra.mxu0 0.0
        %312 = vmatpush.msra.mxu0 0.0
        %313 = vmatpush.msra.mxu0 0.0
        %314 = vmatpush.msra.mxu0 0.0
        %v315 = vand.u32 %v229, 4294901760
        %v316 = vsub.f32 %v229, %v315
        %317 = vmatpush.msra.mxu0 %v316
        %v318 = vand.u32 %v228, 4294901760
        %v319 = vsub.f32 %v228, %v318
        %320 = vmatpush.msra.mxu0 %v319
        %v321 = vand.u32 %v227, 4294901760
        %v322 = vsub.f32 %v227, %v321
        %323 = vmatpush.msra.mxu0 %v322
        %v324 = vand.u32 %v226, 4294901760
        %v325 = vsub.f32 %v226, %v324
        %326 = vmatpush.msra.mxu0 %v325
        %v327 = vand.u32 %v231, 4294901760
        %v328 = vsub.f32 %v231, %v327
        %329 = vmatmul.f32.gmra.mxu0 %v328
        %v330 = vpop.f32.mrf.mxu0
        %v331 = vadd.f32 %v301, %v330
        %332 = vdwg.mxu0
        %333 = vmatpush.msra.mxu0 0.0
        %334 = vmatpush.msra.mxu0 0.0
        %335 = vmatpush.msra.mxu0 0.0
        %336 = vmatpush.msra.mxu0 0.0
        %337 = vmatpush.msra.mxu0 0.0
        %338 = vmatpush.msra.mxu0 0.0
        %339 = vmatpush.msra.mxu0 0.0
        %340 = vmatpush.msra.mxu0 0.0
        %341 = vmatpush.msra.mxu0 0.0
        %342 = vmatpush.msra.mxu0 0.0
        %343 = vmatpush.msra.mxu0 0.0
        %344 = vmatpush.msra.mxu0 0.0
        %v345 = vand.u32 %v229, 4294901760
        %346 = vmatpush.msra.mxu0 %v345
        %v347 = vand.u32 %v228, 4294901760
        %348 = vmatpush.msra.mxu0 %v347
        %v349 = vand.u32 %v227, 4294901760
        %350 = vmatpush.msra.mxu0 %v349
        %v351 = vand.u32 %v226, 4294901760
        %352 = vmatpush.msra.mxu0 %v351
        %v353 = vand.u32 %v231, 4294901760
        %v354 = vsub.f32 %v231, %v353
        %v355 = vand.u32 %v354, 4294901760
        %356 = vmatmul.f32.gmra.mxu0 %v355
        %v357 = vpop.f32.mrf.mxu0
        %v358 = vadd.f32 %v331, %v357
        %359 = vdwg.mxu0
        %360 = vmatpush.msra.mxu0 0.0
        %361 = vmatpush.msra.mxu0 0.0
        %362 = vmatpush.msra.mxu0 0.0
        %363 = vmatpush.msra.mxu0 0.0
        %364 = vmatpush.msra.mxu0 0.0
        %365 = vmatpush.msra.mxu0 0.0
        %366 = vmatpush.msra.mxu0 0.0
        %367 = vmatpush.msra.mxu0 0.0
        %368 = vmatpush.msra.mxu0 0.0
        %369 = vmatpush.msra.mxu0 0.0
        %370 = vmatpush.msra.mxu0 0.0
        %371 = vmatpush.msra.mxu0 0.0
        %v372 = vand.u32 %v229, 4294901760
        %v373 = vsub.f32 %v229, %v372
        %v374 = vand.u32 %v373, 4294901760
        %375 = vmatpush.msra.mxu0 %v374
        %v376 = vand.u32 %v228, 4294901760
        %v377 = vsub.f32 %v228, %v376
        %v378 = vand.u32 %v377, 4294901760
        %379 = vmatpush.msra.mxu0 %v378
        %v380 = vand.u32 %v227, 4294901760
        %v381 = vsub.f32 %v227, %v380
        %v382 = vand.u32 %v381, 4294901760
        %383 = vmatpush.msra.mxu0 %v382
        %v384 = vand.u32 %v226, 4294901760
        %v385 = vsub.f32 %v226, %v384
        %v386 = vand.u32 %v385, 4294901760
        %387 = vmatpush.msra.mxu0 %v386
        %v388 = vand.u32 %v231, 4294901760
        %389 = vmatmul.f32.gmra.mxu0 %v388
        %v390 = vpop.f32.mrf.mxu0
        %v391 = vadd.f32 %v358, %v390
        %392 = vdwg.mxu0
        %393 = vmatpush.msra.mxu0 0.0
        %394 = vmatpush.msra.mxu0 0.0
        %395 = vmatpush.msra.mxu0 0.0
        %396 = vmatpush.msra.mxu0 0.0
        %397 = vmatpush.msra.mxu0 0.0
        %398 = vmatpush.msra.mxu0 0.0
        %399 = vmatpush.msra.mxu0 0.0
        %400 = vmatpush.msra.mxu0 0.0
        %401 = vmatpush.msra.mxu0 0.0
        %402 = vmatpush.msra.mxu0 0.0
        %403 = vmatpush.msra.mxu0 0.0
        %404 = vmatpush.msra.mxu0 0.0
        %v405 = vand.u32 %v229, 4294901760
        %406 = vmatpush.msra.mxu0 %v405
        %v407 = vand.u32 %v228, 4294901760
        %408 = vmatpush.msra.mxu0 %v407
        %v409 = vand.u32 %v227, 4294901760
        %410 = vmatpush.msra.mxu0 %v409
        %v411 = vand.u32 %v226, 4294901760
        %412 = vmatpush.msra.mxu0 %v411
        %v413 = vand.u32 %v231, 4294901760
        %414 = vmatmul.f32.gmra.mxu0 %v413
        %v415 = vpop.f32.mrf.mxu0
        %v416 = vadd.f32 %v391, %v415
        %417 = vdwg.mxu0
        %v418 = vsub.f32 %v416, %v225
        %v419 = vld [vmem:[%s2] sm:$0x1]
        %v421 = vperm.slane %v419, 0
        %v423 = vadd.f32 %v418, %v421
        %v424 = vmul.f32 %v423, 0.70710677
        %vm425 = vcmp.lt.f32.partialorder %v424, 0.0
        %v426 = vsel %vm425, -1.0, 1.0
        %v427 = vmul.f32 %v424, %v426
        %v428 = vmul.f32 %v427, 0.3275911
        %v429 = vadd.f32 %v428, 1.0
        %v430 = vrcp.pop %v429
        %v431 = vmul.f32 %v429, %v430
        %v432 = vsub.f32 1.0, %v431
        %v433 = vmul.f32 %v430, %v432
        %v434 = vadd.f32 %v430, %v433
        %vm435 = vweird.f32 %v429
        %vm436 = vweird.f32 %v430
        %vm437 = vmor %vm435, %vm436
        %v438 = vsel %vm437, %v430, %v434
        %v439 = vand.u32 2147483647, %v429
        %vm440 = vcmp.eq.f32.partialorder %v439, 8.507059e+37
        %v441 = vand.u32 %v429, 2147483648
        %v442 = vor.u32 1.1754944e-38, %v441
        %v443 = vsel %vm440, %v442, %v438
        %v444 = vmul.f32 %v443, 1.0614054
        %v445 = vsub.f32 %v444, 1.4531521
        %v446 = vmul.f32 %v445, %v443
        %v447 = vadd.f32 %v446, 1.4214138
        %v448 = vmul.f32 %v447, %v443
        %v449 = vsub.f32 %v448, 0.28449672
        %v450 = vmul.f32 %v449, %v443
        %v451 = vadd.f32 %v450, 0.2548296
        %v452 = vmul.f32 %v451, %v443
        %v453 = vsub.f32 0.0, %v427
        %v454 = vmul.f32 %v453, %v427
        %v455 = vmul.f32 %v454, 1.442695
        %v456 = vpow.pop %v455
        %v457 = vmul.f32 %v452, %v456
        %v458 = vsub.f32 1.0, %v457
        %v459 = vmul.f32 %v426, %v458
        %v460 = vmul.f32 %v423, 0.5
        %v461 = vadd.f32 %v459, 1.0
        %v462 = vmul.f32 %v460, %v461
        %v463 = vmul.f32 %v462, %v462
        %464 = vadd.xlane.f32.xlu0 %v463
        %v465 = vpop.xlane.xlu0 %464
        %v466 = vld [vmem:[%s3] sm:$0xff]
        %v467 = vld [vmem:[%s3 + $0x8] sm:$0xff]
        %v468 = vld [vmem:[%s3 + $0x10] sm:$0xff]
        %v469 = vld [vmem:[%s3 + $0x18] sm:$0xff]
        %v470 = vld [vmem:[%s3 + $0x20] sm:$0xff]
        %v471 = vld [vmem:[%s3 + $0x28] sm:$0xff]
        %v472 = vld [vmem:[%s3 + $0x30] sm:$0xff]
        %v473 = vld [vmem:[%s3 + $0x38] sm:$0xff]
        %v474 = vld [vmem:[%s3 + $0x40] sm:$0xff]
        %v475 = vld [vmem:[%s3 + $0x48] sm:$0xff]
        %v476 = vld [vmem:[%s3 + $0x50] sm:$0xff]
        %v477 = vld [vmem:[%s3 + $0x58] sm:$0xff]
        %v478 = vld [vmem:[%s3 + $0x60] sm:$0xff]
        %v479 = vld [vmem:[%s3 + $0x68] sm:$0xff]
        %v480 = vld [vmem:[%s3 + $0x70] sm:$0xff]
        %v481 = vld [vmem:[%s3 + $0x78] sm:$0xff]
        %v482 = vand.u32 %v481, 4294901760
        %483 = vmatpush.msra.mxu0 %v482
        %v484 = vand.u32 %v480, 4294901760
        %485 = vmatpush.msra.mxu0 %v484
        %v486 = vand.u32 %v479, 4294901760
        %487 = vmatpush.msra.mxu0 %v486
        %v488 = vand.u32 %v478, 4294901760
        %489 = vmatpush.msra.mxu0 %v488
        %v490 = vand.u32 %v477, 4294901760
        %491 = vmatpush.msra.mxu0 %v490
        %v492 = vand.u32 %v476, 4294901760
        %493 = vmatpush.msra.mxu0 %v492
        %v494 = vand.u32 %v475, 4294901760
        %495 = vmatpush.msra.mxu0 %v494
        %v496 = vand.u32 %v474, 4294901760
        %497 = vmatpush.msra.mxu0 %v496
        %v498 = vand.u32 %v473, 4294901760
        %499 = vmatpush.msra.mxu0 %v498
        %v500 = vand.u32 %v472, 4294901760
        %501 = vmatpush.msra.mxu0 %v500
        %v502 = vand.u32 %v471, 4294901760
        %503 = vmatpush.msra.mxu0 %v502
        %v504 = vand.u32 %v470, 4294901760
        %505 = vmatpush.msra.mxu0 %v504
        %v506 = vand.u32 %v469, 4294901760
        %507 = vmatpush.msra.mxu0 %v506
        %v508 = vand.u32 %v468, 4294901760
        %509 = vmatpush.msra.mxu0 %v508
        %v510 = vand.u32 %v467, 4294901760
        %511 = vmatpush.msra.mxu0 %v510
        %v512 = vand.u32 %v466, 4294901760
        %513 = vmatpush.msra.mxu0 %v512
        %v514 = vand.u32 %v462, 4294901760
        %v515 = vsub.f32 %v462, %v514
        %v516 = vand.u32 %v515, 4294901760
        %v517 = vsub.f32 %v515, %v516
        %v518 = vand.u32 %v517, 4294901760
        %519 = vmatmul.f32.gmra.mxu0 %v518
        %v520 = vpop.f32.mrf.mxu0
        %v521 = vadd.f32 %v465, %v520
        %522 = vdwg.mxu0
        %v523 = vand.u32 %v481, 4294901760
        %v524 = vsub.f32 %v481, %v523
        %v525 = vand.u32 %v524, 4294901760
        %v526 = vsub.f32 %v524, %v525
        %v527 = vand.u32 %v526, 4294901760
        %528 = vmatpush.msra.mxu0 %v527
        %v529 = vand.u32 %v480, 4294901760
        %v530 = vsub.f32 %v480, %v529
        %v531 = vand.u32 %v530, 4294901760
        %v532 = vsub.f32 %v530, %v531
        %v533 = vand.u32 %v532, 4294901760
        %534 = vmatpush.msra.mxu0 %v533
        %v535 = vand.u32 %v479, 4294901760
        %v536 = vsub.f32 %v479, %v535
        %v537 = vand.u32 %v536, 4294901760
        %v538 = vsub.f32 %v536, %v537
        %v539 = vand.u32 %v538, 4294901760
        %540 = vmatpush.msra.mxu0 %v539
        %v541 = vand.u32 %v478, 4294901760
        %v542 = vsub.f32 %v478, %v541
        %v543 = vand.u32 %v542, 4294901760
        %v544 = vsub.f32 %v542, %v543
        %v545 = vand.u32 %v544, 4294901760
        %546 = vmatpush.msra.mxu0 %v545
        %v547 = vand.u32 %v477, 4294901760
        %v548 = vsub.f32 %v477, %v547
        %v549 = vand.u32 %v548, 4294901760
        %v550 = vsub.f32 %v548, %v549
        %v551 = vand.u32 %v550, 4294901760
        %552 = vmatpush.msra.mxu0 %v551
        %v553 = vand.u32 %v476, 4294901760
        %v554 = vsub.f32 %v476, %v553
        %v555 = vand.u32 %v554, 4294901760
        %v556 = vsub.f32 %v554, %v555
        %v557 = vand.u32 %v556, 4294901760
        %558 = vmatpush.msra.mxu0 %v557
        %v559 = vand.u32 %v475, 4294901760
        %v560 = vsub.f32 %v475, %v559
        %v561 = vand.u32 %v560, 4294901760
        %v562 = vsub.f32 %v560, %v561
        %v563 = vand.u32 %v562, 4294901760
        %564 = vmatpush.msra.mxu0 %v563
        %v565 = vand.u32 %v474, 4294901760
        %v566 = vsub.f32 %v474, %v565
        %v567 = vand.u32 %v566, 4294901760
        %v568 = vsub.f32 %v566, %v567
        %v569 = vand.u32 %v568, 4294901760
        %570 = vmatpush.msra.mxu0 %v569
        %v571 = vand.u32 %v473, 4294901760
        %v572 = vsub.f32 %v473, %v571
        %v573 = vand.u32 %v572, 4294901760
        %v574 = vsub.f32 %v572, %v573
        %v575 = vand.u32 %v574, 4294901760
        %576 = vmatpush.msra.mxu0 %v575
        %v577 = vand.u32 %v472, 4294901760
        %v578 = vsub.f32 %v472, %v577
        %v579 = vand.u32 %v578, 4294901760
        %v580 = vsub.f32 %v578, %v579
        %v581 = vand.u32 %v580, 4294901760
        %582 = vmatpush.msra.mxu0 %v581
        %v583 = vand.u32 %v471, 4294901760
        %v584 = vsub.f32 %v471, %v583
        %v585 = vand.u32 %v584, 4294901760
        %v586 = vsub.f32 %v584, %v585
        %v587 = vand.u32 %v586, 4294901760
        %588 = vmatpush.msra.mxu0 %v587
        %v589 = vand.u32 %v470, 4294901760
        %v590 = vsub.f32 %v470, %v589
        %v591 = vand.u32 %v590, 4294901760
        %v592 = vsub.f32 %v590, %v591
        %v593 = vand.u32 %v592, 4294901760
        %594 = vmatpush.msra.mxu0 %v593
        %v595 = vand.u32 %v469, 4294901760
        %v596 = vsub.f32 %v469, %v595
        %v597 = vand.u32 %v596, 4294901760
        %v598 = vsub.f32 %v596, %v597
        %v599 = vand.u32 %v598, 4294901760
        %600 = vmatpush.msra.mxu0 %v599
        %v601 = vand.u32 %v468, 4294901760
        %v602 = vsub.f32 %v468, %v601
        %v603 = vand.u32 %v602, 4294901760
        %v604 = vsub.f32 %v602, %v603
        %v605 = vand.u32 %v604, 4294901760
        %606 = vmatpush.msra.mxu0 %v605
        %v607 = vand.u32 %v467, 4294901760
        %v608 = vsub.f32 %v467, %v607
        %v609 = vand.u32 %v608, 4294901760
        %v610 = vsub.f32 %v608, %v609
        %v611 = vand.u32 %v610, 4294901760
        %612 = vmatpush.msra.mxu0 %v611
        %v613 = vand.u32 %v466, 4294901760
        %v614 = vsub.f32 %v466, %v613
        %v615 = vand.u32 %v614, 4294901760
        %v616 = vsub.f32 %v614, %v615
        %v617 = vand.u32 %v616, 4294901760
        %618 = vmatpush.msra.mxu0 %v617
        %v619 = vand.u32 %v462, 4294901760
        %620 = vmatmul.f32.gmra.mxu0 %v619
        %v621 = vpop.f32.mrf.mxu0
        %v622 = vadd.f32 %v521, %v621
        %623 = vdwg.mxu0
        %v624 = vand.u32 %v481, 4294901760
        %v625 = vsub.f32 %v481, %v624
        %626 = vmatpush.msra.mxu0 %v625
        %v627 = vand.u32 %v480, 4294901760
        %v628 = vsub.f32 %v480, %v627
        %629 = vmatpush.msra.mxu0 %v628
        %v630 = vand.u32 %v479, 4294901760
        %v631 = vsub.f32 %v479, %v630
        %632 = vmatpush.msra.mxu0 %v631
        %v633 = vand.u32 %v478, 4294901760
        %v634 = vsub.f32 %v478, %v633
        %635 = vmatpush.msra.mxu0 %v634
        %v636 = vand.u32 %v477, 4294901760
        %v637 = vsub.f32 %v477, %v636
        %638 = vmatpush.msra.mxu0 %v637
        %v639 = vand.u32 %v476, 4294901760
        %v640 = vsub.f32 %v476, %v639
        %641 = vmatpush.msra.mxu0 %v640
        %v642 = vand.u32 %v475, 4294901760
        %v643 = vsub.f32 %v475, %v642
        %644 = vmatpush.msra.mxu0 %v643
        %v645 = vand.u32 %v474, 4294901760
        %v646 = vsub.f32 %v474, %v645
        %647 = vmatpush.msra.mxu0 %v646
        %v648 = vand.u32 %v473, 4294901760
        %v649 = vsub.f32 %v473, %v648
        %650 = vmatpush.msra.mxu0 %v649
        %v651 = vand.u32 %v472, 4294901760
        %v652 = vsub.f32 %v472, %v651
        %653 = vmatpush.msra.mxu0 %v652
        %v654 = vand.u32 %v471, 4294901760
        %v655 = vsub.f32 %v471, %v654
        %656 = vmatpush.msra.mxu0 %v655
        %v657 = vand.u32 %v470, 4294901760
        %v658 = vsub.f32 %v470, %v657
        %659 = vmatpush.msra.mxu0 %v658
        %v660 = vand.u32 %v469, 4294901760
        %v661 = vsub.f32 %v469, %v660
        %662 = vmatpush.msra.mxu0 %v661
        %v663 = vand.u32 %v468, 4294901760
        %v664 = vsub.f32 %v468, %v663
        %665 = vmatpush.msra.mxu0 %v664
        %v666 = vand.u32 %v467, 4294901760
        %v667 = vsub.f32 %v467, %v666
        %668 = vmatpush.msra.mxu0 %v667
        %v669 = vand.u32 %v466, 4294901760
        %v670 = vsub.f32 %v466, %v669
        %671 = vmatpush.msra.mxu0 %v670
        %v672 = vand.u32 %v462, 4294901760
        %v673 = vsub.f32 %v462, %v672
        %674 = vmatmul.f32.gmra.mxu0 %v673
        %v675 = vpop.f32.mrf.mxu0
        %v676 = vadd.f32 %v622, %v675
        %677 = vdwg.mxu0
        %v678 = vand.u32 %v481, 4294901760
        %679 = vmatpush.msra.mxu0 %v678
        %v680 = vand.u32 %v480, 4294901760
        %681 = vmatpush.msra.mxu0 %v680
        %v682 = vand.u32 %v479, 4294901760
        %683 = vmatpush.msra.mxu0 %v682
        %v684 = vand.u32 %v478, 4294901760
        %685 = vmatpush.msra.mxu0 %v684
        %v686 = vand.u32 %v477, 4294901760
        %687 = vmatpush.msra.mxu0 %v686
        %v688 = vand.u32 %v476, 4294901760
        %689 = vmatpush.msra.mxu0 %v688
        %v690 = vand.u32 %v475, 4294901760
        %691 = vmatpush.msra.mxu0 %v690
        %v692 = vand.u32 %v474, 4294901760
        %693 = vmatpush.msra.mxu0 %v692
        %v694 = vand.u32 %v473, 4294901760
        %695 = vmatpush.msra.mxu0 %v694
        %v696 = vand.u32 %v472, 4294901760
        %697 = vmatpush.msra.mxu0 %v696
        %v698 = vand.u32 %v471, 4294901760
        %699 = vmatpush.msra.mxu0 %v698
        %v700 = vand.u32 %v470, 4294901760
        %701 = vmatpush.msra.mxu0 %v700
        %v702 = vand.u32 %v469, 4294901760
        %703 = vmatpush.msra.mxu0 %v702
        %v704 = vand.u32 %v468, 4294901760
        %705 = vmatpush.msra.mxu0 %v704
        %v706 = vand.u32 %v467, 4294901760
        %707 = vmatpush.msra.mxu0 %v706
        %v708 = vand.u32 %v466, 4294901760
        %709 = vmatpush.msra.mxu0 %v708
        %v710 = vand.u32 %v462, 4294901760
        %v711 = vsub.f32 %v462, %v710
        %v712 = vand.u32 %v711, 4294901760
        %713 = vmatmul.f32.gmra.mxu0 %v712
        %v714 = vpop.f32.mrf.mxu0
        %v715 = vadd.f32 %v676, %v714
        %716 = vdwg.mxu0
        %v717 = vand.u32 %v481, 4294901760
        %v718 = vsub.f32 %v481, %v717
        %v719 = vand.u32 %v718, 4294901760
        %720 = vmatpush.msra.mxu0 %v719
        %v721 = vand.u32 %v480, 4294901760
        %v722 = vsub.f32 %v480, %v721
        %v723 = vand.u32 %v722, 4294901760
        %724 = vmatpush.msra.mxu0 %v723
        %v725 = vand.u32 %v479, 4294901760
        %v726 = vsub.f32 %v479, %v725
        %v727 = vand.u32 %v726, 4294901760
        %728 = vmatpush.msra.mxu0 %v727
        %v729 = vand.u32 %v478, 4294901760
        %v730 = vsub.f32 %v478, %v729
        %v731 = vand.u32 %v730, 4294901760
        %732 = vmatpush.msra.mxu0 %v731
        %v733 = vand.u32 %v477, 4294901760
        %v734 = vsub.f32 %v477, %v733
        %v735 = vand.u32 %v734, 4294901760
        %736 = vmatpush.msra.mxu0 %v735
        %v737 = vand.u32 %v476, 4294901760
        %v738 = vsub.f32 %v476, %v737
        %v739 = vand.u32 %v738, 4294901760
        %740 = vmatpush.msra.mxu0 %v739
        %v741 = vand.u32 %v475, 4294901760
        %v742 = vsub.f32 %v475, %v741
        %v743 = vand.u32 %v742, 4294901760
        %744 = vmatpush.msra.mxu0 %v743
        %v745 = vand.u32 %v474, 4294901760
        %v746 = vsub.f32 %v474, %v745
        %v747 = vand.u32 %v746, 4294901760
        %748 = vmatpush.msra.mxu0 %v747
        %v749 = vand.u32 %v473, 4294901760
        %v750 = vsub.f32 %v473, %v749
        %v751 = vand.u32 %v750, 4294901760
        %752 = vmatpush.msra.mxu0 %v751
        %v753 = vand.u32 %v472, 4294901760
        %v754 = vsub.f32 %v472, %v753
        %v755 = vand.u32 %v754, 4294901760
        %756 = vmatpush.msra.mxu0 %v755
        %v757 = vand.u32 %v471, 4294901760
        %v758 = vsub.f32 %v471, %v757
        %v759 = vand.u32 %v758, 4294901760
        %760 = vmatpush.msra.mxu0 %v759
        %v761 = vand.u32 %v470, 4294901760
        %v762 = vsub.f32 %v470, %v761
        %v763 = vand.u32 %v762, 4294901760
        %764 = vmatpush.msra.mxu0 %v763
        %v765 = vand.u32 %v469, 4294901760
        %v766 = vsub.f32 %v469, %v765
        %v767 = vand.u32 %v766, 4294901760
        %768 = vmatpush.msra.mxu0 %v767
        %v769 = vand.u32 %v468, 4294901760
        %v770 = vsub.f32 %v468, %v769
        %v771 = vand.u32 %v770, 4294901760
        %772 = vmatpush.msra.mxu0 %v771
        %v773 = vand.u32 %v467, 4294901760
        %v774 = vsub.f32 %v467, %v773
        %v775 = vand.u32 %v774, 4294901760
        %776 = vmatpush.msra.mxu0 %v775
        %v777 = vand.u32 %v466, 4294901760
        %v778 = vsub.f32 %v466, %v777
        %v779 = vand.u32 %v778, 4294901760
        %780 = vmatpush.msra.mxu0 %v779
        %v781 = vand.u32 %v462, 4294901760
        %782 = vmatmul.f32.gmra.mxu0 %v781
        %v783 = vpop.f32.mrf.mxu0
        %v784 = vadd.f32 %v715, %v783
        %785 = vdwg.mxu0
        %v786 = vand.u32 %v481, 4294901760
        %787 = vmatpush.msra.mxu0 %v786
        %v788 = vand.u32 %v480, 4294901760
        %789 = vmatpush.msra.mxu0 %v788
        %v790 = vand.u32 %v479, 4294901760
        %791 = vmatpush.msra.mxu0 %v790
        %v792 = vand.u32 %v478, 4294901760
        %793 = vmatpush.msra.mxu0 %v792
        %v794 = vand.u32 %v477, 4294901760
        %795 = vmatpush.msra.mxu0 %v794
        %v796 = vand.u32 %v476, 4294901760
        %797 = vmatpush.msra.mxu0 %v796
        %v798 = vand.u32 %v475, 4294901760
        %799 = vmatpush.msra.mxu0 %v798
        %v800 = vand.u32 %v474, 4294901760
        %801 = vmatpush.msra.mxu0 %v800
        %v802 = vand.u32 %v473, 4294901760
        %803 = vmatpush.msra.mxu0 %v802
        %v804 = vand.u32 %v472, 4294901760
        %805 = vmatpush.msra.mxu0 %v804
        %v806 = vand.u32 %v471, 4294901760
        %807 = vmatpush.msra.mxu0 %v806
        %v808 = vand.u32 %v470, 4294901760
        %809 = vmatpush.msra.mxu0 %v808
        %v810 = vand.u32 %v469, 4294901760
        %811 = vmatpush.msra.mxu0 %v810
        %v812 = vand.u32 %v468, 4294901760
        %813 = vmatpush.msra.mxu0 %v812
        %v814 = vand.u32 %v467, 4294901760
        %815 = vmatpush.msra.mxu0 %v814
        %v816 = vand.u32 %v466, 4294901760
        %817 = vmatpush.msra.mxu0 %v816
        %v818 = vand.u32 %v462, 4294901760
        %819 = vmatmul.f32.gmra.mxu0 %v818
        %v820 = vpop.f32.mrf.mxu0
        %v821 = vadd.f32 %v784, %v820
        %822 = vdwg.mxu0
        %v823 = vld [vmem:[%s4] sm:$0x1]
        %v825 = vperm.slane %v823, 0
        %v827 = vadd.f32 %v821, %v825
        %v828 = vmax.f32 %v827, 0.0
        %v829 = vrsqrt.pop %v828
        %v830 = vmul.f32 %v829, %v828
        %v831 = vmul.f32 %v830, %v829
        %v832 = vmul.f32 0.5, %v831
        %v833 = vsub.f32 1.5, %v832
        %v834 = vmul.f32 %v829, %v833
        %v835 = vmul.f32 %v828, %v834
        %vm836 = vcmp.eq.f32.partialorder %v828, inf
        %v837 = vsel %vm836, %v828, %v835
        %vm838 = vcmp.eq.f32.partialorder %v828, 0.0
        %v839 = vand.u32 %v828, 2147483648
        %v840 = vsel %vm838, %v839, %v837
        %841 = vst.msk [vmem:[%s215] sm:$0xff] %vm222, %v840
        %s842 = sand.u32 %s137, 1
        %s843 = scalar_lea.sflag [#allocation3], %s842
        %s844 = sand.u32 %s137, 1
        %s845 = smul.addr %s844, 8
        %s846 = scalar_lea.vmem [#allocation2], %s845
        // Predicated region
        $region41: #{tpu_custom_call.1} parent=39 // pred_check
          %p847 = pneg %p147
        $region42: #{tpu_custom_call.1} parent=39 // pred_check_branch
          %849 = sbr.rel (%p847) target = $region44
        $region43: #{tpu_custom_call.1} parent=39 // pred_region
          %851 = vsyncadd %s843, 0
          %s852 = smul.addr %s19, 8
          %s853 = scalar_lea.hbm %s5, %s852
          %s855 = sshll.u32 %s846, 4
          %s856 = int_to_ptr.vmem [resolvable:$true] %s855
          %s857 = sshll.u32 %s853, 4
          %s858 = int_to_ptr.hbm [resolvable:$true] %s857
          %860 = dma.vmem_to_hbm [thread:$0]  %s856, 128, %s858, %s843
        $region44: #{tpu_custom_call.1} parent=39 // pred_fallthru
          _
      $region40: #{tpu_custom_call.1} parent=5 // pred_fallthru
        _
      %p861 = scmp.le.s32.totalorder 2, %s14
      // Predicated region
      $region45: #{tpu_custom_call.1} parent=5 // pred_check
        %p862 = pneg %p861
      $region46: #{tpu_custom_call.1} parent=5 // pred_check_branch
        %864 = sbr.rel (%p862) target = $region48
      $region47: #{tpu_custom_call.1} parent=5 // pred_region
        %s865 = ssub.s32 %s14, 2
        // Predicated region
        $region49: #{tpu_custom_call.1} parent=47 // pred_check
          %p866 = pneg %p153
        $region50: #{tpu_custom_call.1} parent=47 // pred_check_branch
          %868 = sbr.rel (%p866) target = $region52
        $region51: #{tpu_custom_call.1} parent=47 // pred_region
          %s869 = sand.u32 %s138, 1
          %s870 = scalar_lea.sflag [#allocation3], %s869
          %s871 = sand.u32 %s138, 1
          %s872 = smul.addr %s871, 8
          %s873 = scalar_lea.vmem [#allocation2], %s872
          %875 = dma.done %s870, 128
        $region52: #{tpu_custom_call.1} parent=47 // pred_fallthru
          _
      $region48: #{tpu_custom_call.1} parent=5 // pred_fallthru
        _
    $region6: #{tpu_custom_call.1} parent=1 // loop_footer
      %s18 = sadd.s32 1, %s14
    $region7: #{tpu_custom_call.1} parent=1 // loop_footer_branch
      %13 = sbr.rel target = $region3
    $region8: #{tpu_custom_call.1} parent=1 // loop_exit
      _
    %876 = vsyncpa [#allocation3], 1
    %s877 = scalar_lea.sflag [#allocation3], 1
    %878 = vsyncpa %s877, 1

</llo_original>
